<compile_context>
chip_gen: v7x
topology: tpu7x:2x2x1
jax: 0.10.0
libtpu: 0.0.40
codegen_flags: <defaults>
</compile_context>

<pallas_src>
import jax
import jax.numpy as jnp
from jax.experimental import pallas as pl
from jax.experimental.pallas import tpu as pltpu


def _normalize_kernel(x_ref, mean_ref, scale_ref, o_ref):
    # x_ref:     (tm, tn) input tile in VMEM
    # mean_ref:  (tm, 1)  per-row mean        (row = b*C + c)
    # scale_ref: (tm, 1)  per-row 1/std
    # o_ref:     (tm, tn) output tile
    x = x_ref[...].astype(jnp.float32)
    o_ref[...] = ((x - mean_ref[...]) * scale_ref[...]).astype(o_ref.dtype)


def _cdiv(a, b):
    return -(-a // b)


def _round_up(x, m):
    return _cdiv(x, m) * m


def _choose_tiles(M, N, in_itemsize, out_itemsize):
    """Fixed block shapes; the grid uses pl.cdiv so they need not divide (M, N)."""
    # Dtype-aware sublane multiple: f32 tiles as (8,128), bf16 as (16,128),
    # int8/uint8 as (32,128).
    SUB = {4: 8, 2: 16, 1: 32}.get(in_itemsize, 8)
    LANE = 128
    # Per-grid-step budget for (input block + output block).  Double-buffering
    # doubles this, so peak ~8 MiB: safe under every generation's default scoped
    # VMEM (v5e 16 MiB, v6e/v7x 32 MiB) with headroom to spare.
    STEP_BUDGET = 4 << 20
    bpe = in_itemsize + out_itemsize  # one read + one write per element

    # Lane (column) tile: take the full row when it fits with >= SUB rows
    # (longest contiguous HBM runs, lane-dense unmasked stores); otherwise a
    # balanced multiple of 128.
    if N <= LANE or N * SUB * bpe <= STEP_BUDGET:
        tn = N  # full dim -> legal regardless of 128-divisibility
    else:
        tn_max = max(LANE, (STEP_BUDGET // (SUB * bpe)) // LANE * LANE)
        tn = _round_up(_cdiv(N, _cdiv(N, tn_max)), LANE)

    # Sublane (row) tile: fill the remaining budget with a multiple of SUB,
    # balanced across row-blocks so edge blocks aren't tiny.
    tm_max = max(SUB, (STEP_BUDGET // (tn * bpe)) // SUB * SUB)
    if tm_max >= M:
        tm = M  # full dim -> legal regardless of 8-divisibility
    else:
        tm = _round_up(_cdiv(M, _cdiv(M, tm_max)), SUB)
    return tm, tn


def normalize(image, mean, std):
    """Pallas-backed (image - mean[:, None, None]) / std[:, None, None]."""
    squeeze = False
    if image.ndim == 3:            # (C, H, W) -> (1, C, H, W), like torch broadcasting
        image = image[None]
        squeeze = True
    B, C, H, W = image.shape
    M, N = B * C, H * W

    # Output dtype follows torch type promotion (float mean/std => float output,
    # so integer images are not silently truncated back to ints).
    out_dtype = jnp.result_type(image.dtype, jnp.float32)
    in_itemsize = jnp.dtype(image.dtype).itemsize
    out_itemsize = jnp.dtype(out_dtype).itemsize

    x2 = image.reshape(M, N)
    mean_c = jnp.broadcast_to(jnp.asarray(mean, jnp.float32).reshape(-1), (C,))
    std_c = jnp.broadcast_to(jnp.asarray(std, jnp.float32).reshape(-1), (C,))
    mean_rows = jnp.tile(mean_c, B).reshape(M, 1)          # row b*C + c -> mean[c]
    scale_rows = jnp.tile(1.0 / std_c, B).reshape(M, 1)    # row b*C + c -> 1/std[c]

    tm, tn = _choose_tiles(M, N, in_itemsize, out_itemsize)
    grid = (pl.cdiv(M, tm), pl.cdiv(N, tn))

    out2 = pl.pallas_call(
        _normalize_kernel,
        grid=grid,
        in_specs=[
            pl.BlockSpec((tm, tn), lambda i, j: (i, j)),
            pl.BlockSpec((tm, 1), lambda i, j: (i, 0)),
            pl.BlockSpec((tm, 1), lambda i, j: (i, 0)),
        ],
        out_specs=pl.BlockSpec((tm, tn), lambda i, j: (i, j)),
        out_shape=jax.ShapeDtypeStruct((M, N), out_dtype),
        compiler_params=pltpu.CompilerParams(
            dimension_semantics=("parallel", "parallel"),
            vmem_limit_bytes=32 * 1024 * 1024),
        cost_estimate=pl.CostEstimate(
            flops=2 * M * N,
            transcendentals=0,   # divide replaced by a precomputed per-row 1/std
            bytes_accessed=M * N * (in_itemsize + out_itemsize) + 8 * M),
    )(x2, mean_rows, scale_rows)

    out = out2.reshape(B, C, H, W)
    return out[0] if squeeze else out


class Normalization:
    """JAX/Pallas port of the PyTorch Normalization module.

    __init__ stores per-channel mean/std (flattened, broadcast as (C,1,1)).
    forward(image) returns (image - mean) / std.
    """

    def __init__(self, mean, std):
        self.mean = jnp.asarray(mean, jnp.float32).reshape(-1)
        self.std = jnp.asarray(std, jnp.float32).reshape(-1)

    def forward(self, image):
        return normalize(image, self.mean, self.std)

    __call__ = forward


if __name__ == "__main__":
    key = jax.random.PRNGKey(0)
    k_img, k_mean, k_std = jax.random.split(key, 3)

    # Small NCHW shapes consistent with the module: batch=2, channels=4, 16x16.
    B, C, H, W = 2, 4, 16, 16
    image = jax.random.normal(k_img, (B, C, H, W), dtype=jnp.float32)
    mean = 0.1 * jax.random.normal(k_mean, (C,), dtype=jnp.float32)
    std = 0.5 + jnp.abs(jax.random.normal(k_std, (C,), dtype=jnp.float32))

    norm = Normalization(mean, std)
    out = norm.forward(image)
    jax.block_until_ready(out)

    # Cheap sanity check against plain-JAX reference.
    ref = (image - mean.reshape(1, C, 1, 1)) / std.reshape(1, C, 1, 1)
    assert out.shape == image.shape and out.dtype == ref.dtype
    assert jnp.allclose(out, ref, rtol=1e-5, atol=1e-6)

    print("KERNEL_OK")
</pallas_src>

<mosaic_0001>
module attributes {stable_mosaic.version = 11 : i64} {
  func.func @_normalize_kernel(%arg0: i32, %arg1: i32, %arg2: memref<8x256xf32, #tpu.memory_space<vmem>>, %arg3: memref<8x1xf32, #tpu.memory_space<vmem>>, %arg4: memref<8x1xf32, #tpu.memory_space<vmem>>, %arg5: memref<8x256xf32, #tpu.memory_space<vmem>>) attributes {dimension_semantics = [#tpu.dimension_semantics<parallel>, #tpu.dimension_semantics<parallel>], iteration_bounds = array<i64: 1, 1>, scalar_prefetch = 0 : i64, scratch_operands = 0 : i64, tpu.core_type = #tpu.core_type<tc>, window_params = [{transform_indices = @transform_0, window_bounds = array<i64: 8, 256>}, {transform_indices = @transform_1, window_bounds = array<i64: 8, 1>}, {transform_indices = @transform_2, window_bounds = array<i64: 8, 1>}, {transform_indices = @transform_3, window_bounds = array<i64: 8, 256>}]} {
    %c0 = arith.constant 0 : index
    %c0_0 = arith.constant 0 : index
    %0 = vector.load %arg2[%c0, %c0_0] : memref<8x256xf32, #tpu.memory_space<vmem>>, vector<8x256xf32>
    %c0_1 = arith.constant 0 : index
    %c0_2 = arith.constant 0 : index
    %1 = vector.load %arg3[%c0_1, %c0_2] : memref<8x1xf32, #tpu.memory_space<vmem>>, vector<8x1xf32>
    %2 = vector.broadcast %1 : vector<8x1xf32> to vector<8x256xf32>
    %3 = arith.subf %0, %2 : vector<8x256xf32>
    %c0_3 = arith.constant 0 : index
    %c0_4 = arith.constant 0 : index
    %4 = vector.load %arg4[%c0_3, %c0_4] : memref<8x1xf32, #tpu.memory_space<vmem>>, vector<8x1xf32>
    %5 = vector.broadcast %4 : vector<8x1xf32> to vector<8x256xf32>
    %6 = arith.mulf %3, %5 : vector<8x256xf32>
    %c0_5 = arith.constant 0 : index
    %c0_6 = arith.constant 0 : index
    %7 = vector.load %arg5[%c0_5, %c0_6] : memref<8x256xf32, #tpu.memory_space<vmem>>, vector<8x256xf32>
    tpu.vector_store %arg5[%c0_5, %c0_6], %6 {strides = array<i32>} : memref<8x256xf32, #tpu.memory_space<vmem>>, vector<8x256xf32>,
    return
  }
  func.func @transform_0(%arg0: i32, %arg1: i32) -> (i32, i32) {
    %c0_i32 = arith.constant 0 : i32
    return %arg0, %arg1 : i32, i32
  }
  func.func @transform_1(%arg0: i32, %arg1: i32) -> (i32, i32) {
    %c0_i32 = arith.constant 0 : i32
    %c0_i32_0 = arith.constant 0 : i32
    return %arg0, %c0_i32 : i32, i32
  }
  func.func @transform_2(%arg0: i32, %arg1: i32) -> (i32, i32) {
    %c0_i32 = arith.constant 0 : i32
    %c0_i32_0 = arith.constant 0 : i32
    return %arg0, %c0_i32 : i32, i32
  }
  func.func @transform_3(%arg0: i32, %arg1: i32) -> (i32, i32) {
    %c0_i32 = arith.constant 0 : i32
    return %arg0, %arg1 : i32, i32
  }
}

</mosaic_0001>

<llo_original>
// kernel: tpu_custom_call.1
$region0: #{tpu_custom_call.1}
  #allocation0 [shape = 'u32[]', space=smem, size = 0x4, offset = 0x4, fixed_abs, tag = 'smem constant byte address 0x4 - core index']
  #allocation1 [shape = 'u32[144,128]{1,0:T(1,128)}', space=vmem, size = 0x12000, scoped, tag = 'internal scratch']
  %s0 = inlined_call_operand.vmem [shape: f32[8,256], index: 0, kind: input, shape index: {}]
  %s1 = inlined_call_operand.vmem [shape: f32[8,1], index: 1, kind: input, shape index: {}]
  %s2 = inlined_call_operand.vmem [shape: f32[8,1], index: 2, kind: input, shape index: {}]
  %s3 = inlined_call_operand.hbm [shape: f32[8,256], index: 3, kind: output, shape index: {}]
  %s4 = sld [smem:[#allocation0]]
  $region22: #{tpu_custom_call.1} parent=0
    _
  %s6 = ssub.s32 1, %s4
  %s7 = scalar_select 0, %s6, %s4
  $region1: #{tpu_custom_call.1} parent=0
    #allocation2 [shape = 'u8[8192]{0}', space=vmem, size = 0x2000, scoped, tag = 'output window, operand 0, single buffered']
    #allocation3 [shape = 's32[1]{0}', space=sflag, size = 0x4, scoped, tag = 'scoped memory for tpu_custom_call.1']
    %8 = vsyncpa [#allocation3], 0
    // Predicated region
    $region2: #{tpu_custom_call.1} parent=1 // pred_check
      _
    $region3: #{tpu_custom_call.1} parent=1 // pred_check_branch
      %10 = sbr.rel (0) target = $region5
    $region4: #{tpu_custom_call.1} parent=1 // pred_region
      _
    $region5: #{tpu_custom_call.1} parent=1 // pred_fallthru
      _
    // Predicated region
    $region6: #{tpu_custom_call.1} parent=1 // pred_check
      _
    $region7: #{tpu_custom_call.1} parent=1 // pred_check_branch
      %12 = sbr.rel (0) target = $region9
    $region8: #{tpu_custom_call.1} parent=1 // pred_region
      _
    $region9: #{tpu_custom_call.1} parent=1 // pred_fallthru
      _
    // Predicated region
    $region10: #{tpu_custom_call.1} parent=1 // pred_check
      _
    $region11: #{tpu_custom_call.1} parent=1 // pred_check_branch
      %14 = sbr.rel (0) target = $region13
    $region12: #{tpu_custom_call.1} parent=1 // pred_region
      _
    $region13: #{tpu_custom_call.1} parent=1 // pred_fallthru
      _
    %v15 = vld [vmem:[%s0] sm:$0xff]
    %v16 = vld [vmem:[%s0 + $0x8] sm:$0xff]
    %v17 = vld [vmem:[%s1] sm:$0xff]
    %19 = vset.pattern.permute.xlu0 0
    %20 = vperm.xlu0 %19, %v17
    %v21 = vpop.permute.xlu0 %20
    %v23 = vsub.f32 %v15, %v21
    %v24 = vsub.f32 %v16, %v21
    %v25 = vld [vmem:[%s2] sm:$0xff]
    %27 = vset.pattern.permute.xlu0 0
    %28 = vperm.xlu0 %27, %v25
    %v29 = vpop.permute.xlu0 %28
    %v31 = vmul.f32 %v23, %v29
    %v32 = vmul.f32 %v24, %v29
    %33 = vst [vmem:[#allocation2] sm:$0xff] %v31
    %34 = vst [vmem:[#allocation2 + $0x8] sm:$0xff] %v32
    // Predicated region
    $region14: #{tpu_custom_call.1} parent=1 // pred_check
      _
    $region15: #{tpu_custom_call.1} parent=1 // pred_check_branch
      %36 = sbr.rel (0) target = $region17
    $region16: #{tpu_custom_call.1} parent=1 // pred_region
      %s38 = ssub.s32 256, 256
      %39 = vsyncadd [#allocation3], %s38
      %s41 = sshll.u32 [#allocation2], 4
      %s42 = int_to_ptr.vmem [resolvable:$true] %s41
      %44 = dma.vmem_to_hbm [thread:$0]  %s42, 256, %s3, [#allocation3]
    $region17: #{tpu_custom_call.1} parent=1 // pred_fallthru
      _
    // Predicated region
    $region18: #{tpu_custom_call.1} parent=1 // pred_check
      _
    $region19: #{tpu_custom_call.1} parent=1 // pred_check_branch
      %46 = sbr.rel (0) target = $region21
    $region20: #{tpu_custom_call.1} parent=1 // pred_region
      %47 = dma.done [#allocation3], 256
    $region21: #{tpu_custom_call.1} parent=1 // pred_fallthru
      _
    %48 = vsyncpa [#allocation3], 1

</llo_original>
